<compile_context>
chip_gen: v5e
topology: v5e:2x2
jax: 0.10.0
libtpu: 0.0.40
codegen_flags: <defaults>
</compile_context>

<pallas_src>
import numpy as np
import jax
import jax.numpy as jnp
from jax.experimental import pallas as pl
from jax.experimental.pallas import tpu as pltpu


def _round_up(x, m):
    return ((x + m - 1) // m) * m


def _lap_loss_kernel(L_ref, d_ref, out_ref, acc_ref):
    """Grid = (NB, n_chunk, n_m_inner, n_k).

    L_ref : (1, TM, TK)    streamed Laplacian tile (rows x cols).
    d_ref : (1, R,  TK)    coordinate-major deltas (resident per batch index).
    out   : (1, 1, 8, 128) per-(batch, chunk) partial sum of squares.
    acc   : (R, TM) f32    vector accumulator (cross-lane reduce only at finalize).
    """
    m = pl.program_id(2)
    k = pl.program_id(3)

    @pl.when(jnp.logical_and(m == 0, k == 0))
    def _():
        acc_ref[...] = jnp.zeros_like(acc_ref)

    # (R, TM) = d (R, TK) . L_rows (TM, TK)^T — contraction along TK on the MXU.
    part = jax.lax.dot_general(
        d_ref[0], L_ref[0],
        dimension_numbers=(((1,), (1,)), ((), ())),
        preferred_element_type=jnp.float32)
    acc_ref[...] += part * part

    last = jnp.logical_and(m == pl.num_programs(2) - 1, k == pl.num_programs(3) - 1)

    @pl.when(last)
    def _():
        out_ref[...] = jnp.sum(acc_ref[...]) * jnp.ones(out_ref.shape, jnp.float32)


def _select_tiles(V, itemsize, vmem_cap):
    """Return (Vp, TM, TK): padded extent and row / contraction tile sizes."""
    if V <= 128:
        # Full-extent blocks: no padding, no copies, single grid step over V.
        return V, V, V
    Vp = _round_up(V, 128)
    # Contraction tile: largest 128-multiple divisor of Vp, capped at 2048.
    TK = 128
    t = min(Vp, 2048)
    t -= t % 128
    while t >= 128:
        if Vp % t == 0:
            TK = t
            break
        t -= 128
    # Row tile: largest candidate that divides Vp and keeps the double-buffered
    # L tile pair within a generation-aware budget (~40% of physical VMEM).
    l_pair_budget = int(vmem_cap * 0.4)
    TM = 128
    for cand in (1024, 512, 256, 128):
        if Vp % cand == 0 and 2 * cand * TK * itemsize <= l_pair_budget:
            TM = cand
            break
    return Vp, TM, TK


def laplacian_regularization(L, verts, deform_verts):
    """Forward pass of LaplacianRegularization.

    L: uniform graph Laplacian(s); shape (V, V) if the topology is shared across
       the batch (L is streamed exactly once), else (B, V, V).  The kernel
       streams L in L.dtype (pass bf16 to halve HBM traffic; accumulation is
       f32 either way) — cast/cache it once upstream, topology is static.
    verts, deform_verts: (B, V, 3).
    """
    verts = jnp.asarray(verts)
    deform_verts = jnp.asarray(deform_verts)
    B, V, _ = verts.shape

    L = jnp.asarray(L)
    if L.ndim == 2:
        assert L.shape == (V, V)
        L3, NB = L[None], 1                  # shared topology: de-duplicated L
    else:
        assert L.shape == (B, V, V)
        L3, NB = L, B
    if L3.dtype not in (jnp.bfloat16, jnp.float32):
        L3 = L3.astype(jnp.float32)
    comp_dtype = L3.dtype
    itemsize = jnp.dtype(comp_dtype).itemsize

    # Generation-aware VMEM budget (v7x: 64 MiB per TC, v5e/v6e: 128 MiB).
    try:
        vmem_cap = int(getattr(pltpu.get_tpu_info(), "vmem_capacity_bytes", 64 << 20))
    except Exception:
        vmem_cap = 64 << 20
    vmem_cap = max(vmem_cap, 32 << 20)

    Vp, TM, TK = _select_tiles(V, itemsize, vmem_cap)
    n_m_total = Vp // TM
    n_k = Vp // TK
    # Split the row-tile axis into 2 "parallel" chunks so both v7x TensorCores
    # stream disjoint halves of L even when NB == 1 (no-op on 1-TC v5e/v6e).
    n_chunk = 2 if (n_m_total % 2 == 0 and n_m_total >= 2) else 1
    n_m_inner = n_m_total // n_chunk

    if Vp != V:
        # Ragged V > 128 only: pad L once (zero rows/cols contribute 0).
        # TODO(synk): cache this padded/converted L across training steps.
        L3 = jnp.zeros((NB, Vp, Vp), comp_dtype).at[:, :V, :V].set(L3)

    # Coordinate-major deltas (tiny: ~3*B*V values), zero-padded.
    d = deform_verts.astype(jnp.float32) - verts.astype(jnp.float32)
    rows = jnp.swapaxes(d, 1, 2)                     # (B, 3, V)
    if NB == 1:
        rows = rows.reshape(1, 3 * B, V)             # pack all meshes into M dim
    nrows = rows.shape[1]
    R = _round_up(nrows, 8)
    d_all = jnp.zeros((NB, R, Vp), jnp.float32).at[:, :nrows, :V].set(rows)
    d_all = d_all.astype(comp_dtype)

    vmem_needed = (2 * (TM * TK + R * TK) * itemsize     # double-buffered L + d tiles
                   + 2 * 8 * 128 * 4                     # double-buffered out block
                   + R * TM * 4                          # accumulator scratch
                   + (1 << 20))
    vmem_limit = int(min(vmem_cap - (4 << 20), max(32 << 20, 2 * vmem_needed)))

    partials = pl.pallas_call(
        _lap_loss_kernel,
        out_shape=jax.ShapeDtypeStruct((NB, n_chunk, 8, 128), jnp.float32),
        grid_spec=pltpu.PrefetchScalarGridSpec(
            num_scalar_prefetch=0,
            grid=(NB, n_chunk, n_m_inner, n_k),
            in_specs=[
                pl.BlockSpec((1, TM, TK),
                             lambda b, c, m, k: (b, c * n_m_inner + m, k)),
                pl.BlockSpec((1, R, TK), lambda b, c, m, k: (b, 0, k)),
            ],
            out_specs=pl.BlockSpec((1, 1, 8, 128), lambda b, c, m, k: (b, c, 0, 0)),
            scratch_shapes=[pltpu.VMEM((R, TM), jnp.float32)],
        ),
        compiler_params=pltpu.CompilerParams(
            dimension_semantics=("parallel", "parallel", "arbitrary", "arbitrary"),
            vmem_limit_bytes=vmem_limit,
        ),
    )(L3, d_all)

    # per-mesh loss_b = sum_of_squares_b / V ;  module returns (1/B) * sum_b loss_b.
    return jnp.sum(partials[:, :, 0, 0]) / (B * V)


# ----------------------------- glue (plain JAX / numpy) -----------------------------
# TODO(synk): TriangleMesh list handling / check_parameters asserts and the
# uniform-Laplacian construction from faces are host-side Python, done here in glue.

def make_grid_mesh(n):
    """Simple n x n planar triangle mesh. Returns verts (n*n, 3), faces (F, 3)."""
    xs, ys = np.meshgrid(np.arange(n, dtype=np.float32),
                         np.arange(n, dtype=np.float32), indexing="ij")
    verts = np.stack([xs.ravel(), ys.ravel(), np.zeros(n * n, np.float32)], axis=1)
    faces = []
    for i in range(n - 1):
        for j in range(n - 1):
            v00 = i * n + j
            v01 = i * n + j + 1
            v10 = (i + 1) * n + j
            v11 = (i + 1) * n + j + 1
            faces.append([v00, v01, v11])
            faces.append([v00, v11, v10])
    return verts, np.asarray(faces, np.int32)


def uniform_laplacian(faces, V):
    """L = D^-1 A - I (neighbor mean minus vertex)."""
    A = np.zeros((V, V), np.float32)
    for f in faces:
        for (i, j) in ((f[0], f[1]), (f[1], f[2]), (f[2], f[0])):
            A[i, j] = 1.0
            A[j, i] = 1.0
    deg = np.maximum(A.sum(axis=1, keepdims=True), 1.0)
    return A / deg - np.eye(V, dtype=np.float32)


def reference_loss(L, verts, deform_verts):
    lap1 = jnp.einsum("bij,bjc->bic", L, verts)
    lap2 = jnp.einsum("bij,bjc->bic", L, deform_verts)
    per_mesh = jnp.mean(jnp.sum((lap1 - lap2) ** 2, axis=-1), axis=-1)
    return jnp.mean(per_mesh)


if __name__ == "__main__":
    key = jax.random.PRNGKey(0)
    k1, k2, k3, k4 = jax.random.split(key, 4)

    # ---- Test 1: shared-topology batch, f32 L (L streamed once, tight tol) ----
    B, n = 2, 8
    V = n * n                                   # 64 vertices per mesh
    base_verts, faces = make_grid_mesh(n)
    L_np = uniform_laplacian(faces, V)

    verts = jnp.asarray(base_verts)[None, :, :] + 0.01 * jax.random.normal(
        k1, (B, V, 3), dtype=jnp.float32)
    deform_verts = verts + 0.1 * jax.random.normal(k2, (B, V, 3), dtype=jnp.float32)
    L_shared = jnp.asarray(L_np)                                    # (V, V)
    L_tiled = jnp.asarray(np.tile(L_np[None, :, :], (B, 1, 1)))     # (B, V, V) for ref

    loss_shared = jax.block_until_ready(
        laplacian_regularization(L_shared, verts, deform_verts))
    ref = jax.block_until_ready(reference_loss(L_tiled, verts, deform_verts))
    assert np.allclose(np.asarray(loss_shared), np.asarray(ref),
                       rtol=1e-5, atol=1e-6), (loss_shared, ref)

    # ---- Test 2: per-mesh L, bf16 stream (cast once upstream & reused) ----
    L_bf16 = L_tiled.astype(jnp.bfloat16)
    loss_bf16 = jax.block_until_ready(
        laplacian_regularization(L_bf16, verts, deform_verts))
    assert np.allclose(np.asarray(loss_bf16), np.asarray(ref),
                       rtol=5e-2, atol=1e-3), (loss_bf16, ref)

    # ---- Test 3: ragged small V (full-extent blocks, no padding copy), B=1 ----
    n3 = 7
    V3 = n3 * n3                                # 49 (not a multiple of 8 or 128)
    bv3, faces3 = make_grid_mesh(n3)
    L3_np = uniform_laplacian(faces3, V3)
    verts3 = jnp.asarray(bv3)[None, :, :] + 0.01 * jax.random.normal(
        k3, (1, V3, 3), dtype=jnp.float32)
    deform3 = verts3 + 0.1 * jax.random.normal(k4, (1, V3, 3), dtype=jnp.float32)
    L3 = jnp.asarray(L3_np)
    loss3 = jax.block_until_ready(laplacian_regularization(L3, verts3, deform3))
    ref3 = jax.block_until_ready(reference_loss(L3[None], verts3, deform3))
    assert np.allclose(np.asarray(loss3), np.asarray(ref3),
                       rtol=1e-5, atol=1e-6), (loss3, ref3)

    print("KERNEL_OK")
</pallas_src>

<mosaic_0001>
module attributes {stable_mosaic.version = 11 : i64} {
  func.func @_lap_loss_kernel(%arg0: i32, %arg1: i32, %arg2: i32, %arg3: i32, %arg4: memref<1x64x64xf32, #tpu.memory_space<vmem>>, %arg5: memref<1x8x64xf32, #tpu.memory_space<vmem>>, %arg6: memref<1x1x8x128xf32, #tpu.memory_space<vmem>>, %arg7: memref<8x64xf32, #tpu.memory_space<vmem>>) attributes {dimension_semantics = [#tpu.dimension_semantics<parallel>, #tpu.dimension_semantics<parallel>, #tpu.dimension_semantics<arbitrary>, #tpu.dimension_semantics<arbitrary>], iteration_bounds = array<i64: 1, 1, 1, 1>, scalar_prefetch = 0 : i64, scratch_operands = 1 : i64, tpu.core_type = #tpu.core_type<tc>, window_params = [{transform_indices = @transform_0, window_bounds = array<i64: 1, 64, 64>}, {transform_indices = @transform_1, window_bounds = array<i64: 1, 8, 64>}, {transform_indices = @transform_2, window_bounds = array<i64: 1, 1, 8, 128>}]} {
    %c0_i32 = arith.constant 0 : i32
    %0 = arith.cmpi eq, %arg2, %c0_i32 : i32
    %c0_i32_0 = arith.constant 0 : i32
    %1 = arith.cmpi eq, %arg3, %c0_i32_0 : i32
    %2 = arith.andi %0, %1 : i1
    %3 = arith.extui %2 : i1 to i32
    %c0_i32_1 = arith.constant 0 : i32
    %4 = arith.cmpi ne, %3, %c0_i32_1 : i32
    scf.if %4 {
      %cst_14 = arith.constant 0.000000e+00 : f32
      %19 = vector.broadcast %cst_14 : f32 to vector<8x64xf32>
      %c0_15 = arith.constant 0 : index
      %c0_16 = arith.constant 0 : index
      %20 = vector.load %arg7[%c0_15, %c0_16] : memref<8x64xf32, #tpu.memory_space<vmem>>, vector<8x64xf32>
      tpu.vector_store %arg7[%c0_15, %c0_16], %19 {strides = array<i32>} : memref<8x64xf32, #tpu.memory_space<vmem>>, vector<8x64xf32>,
    } else {
    }
    %c0 = arith.constant 0 : index
    %c0_2 = arith.constant 0 : index
    %c0_3 = arith.constant 0 : index
    %5 = vector.load %arg5[%c0, %c0_2, %c0_3] : memref<1x8x64xf32, #tpu.memory_space<vmem>>, vector<1x8x64xf32>
    %6 = vector.shape_cast %5 : vector<1x8x64xf32> to vector<8x64xf32>
    %c0_4 = arith.constant 0 : index
    %c0_5 = arith.constant 0 : index
    %c0_6 = arith.constant 0 : index
    %7 = vector.load %arg4[%c0_4, %c0_5, %c0_6] : memref<1x64x64xf32, #tpu.memory_space<vmem>>, vector<1x64x64xf32>
    %8 = vector.shape_cast %7 : vector<1x64x64xf32> to vector<64x64xf32>
    %cst = arith.constant dense<0.000000e+00> : vector<8x64xf32>
    %9 = tpu.matmul %6, %8, %cst {dimension_numbers = #tpu.dot_dimension_numbers<[1], [1], [0], [0], [0, 0, 1, 0], [], []>} : vector<8x64xf32>, vector<64x64xf32>, vector<8x64xf32> -> vector<8x64xf32>
    %c0_7 = arith.constant 0 : index
    %c0_8 = arith.constant 0 : index
    %10 = vector.load %arg7[%c0_7, %c0_8] : memref<8x64xf32, #tpu.memory_space<vmem>>, vector<8x64xf32>
    %11 = arith.mulf %9, %9 : vector<8x64xf32>
    %12 = arith.addf %10, %11 : vector<8x64xf32>
    %c0_9 = arith.constant 0 : index
    %c0_10 = arith.constant 0 : index
    %13 = vector.load %arg7[%c0_9, %c0_10] : memref<8x64xf32, #tpu.memory_space<vmem>>, vector<8x64xf32>
    tpu.vector_store %arg7[%c0_9, %c0_10], %12 {strides = array<i32>} : memref<8x64xf32, #tpu.memory_space<vmem>>, vector<8x64xf32>,
    %c0_i32_11 = arith.constant 0 : i32
    %14 = arith.cmpi eq, %arg2, %c0_i32_11 : i32
    %c0_i32_12 = arith.constant 0 : i32
    %15 = arith.cmpi eq, %arg3, %c0_i32_12 : i32
    %16 = arith.andi %14, %15 : i1
    %17 = arith.extui %16 : i1 to i32
    %c0_i32_13 = arith.constant 0 : i32
    %18 = arith.cmpi ne, %17, %c0_i32_13 : i32
    scf.if %18 {
      %c0_14 = arith.constant 0 : index
      %c0_15 = arith.constant 0 : index
      %19 = vector.load %arg7[%c0_14, %c0_15] : memref<8x64xf32, #tpu.memory_space<vmem>>, vector<8x64xf32>
      %20 = vector.shape_cast %19 : vector<8x64xf32> to vector<1x8x64xf32>
      %cst_16 = arith.constant dense<0.000000e+00> : vector<1xf32>
      %21 = vector.multi_reduction <add>, %20, %cst_16 [1, 2] : vector<1x8x64xf32> to vector<1xf32>
      %22 = vector.shape_cast %21 : vector<1xf32> to vector<1x1x1xf32>
      %23 = vector.extract %22[0, 0, 0] : f32 from vector<1x1x1xf32>
      %cst_17 = arith.constant 1.000000e+00 : f32
      %24 = vector.broadcast %cst_17 : f32 to vector<1x1x8x128xf32>
      %25 = vector.broadcast %23 : f32 to vector<1x1x8x128xf32>
      %26 = arith.mulf %25, %24 : vector<1x1x8x128xf32>
      %c0_18 = arith.constant 0 : index
      %c0_19 = arith.constant 0 : index
      %c0_20 = arith.constant 0 : index
      %c0_21 = arith.constant 0 : index
      %27 = vector.load %arg6[%c0_18, %c0_19, %c0_20, %c0_21] : memref<1x1x8x128xf32, #tpu.memory_space<vmem>>, vector<1x1x8x128xf32>
      tpu.vector_store %arg6[%c0_18, %c0_19, %c0_20, %c0_21], %26 {strides = array<i32>} : memref<1x1x8x128xf32, #tpu.memory_space<vmem>>, vector<1x1x8x128xf32>,
    } else {
    }
    return
  }
  func.func @transform_0(%arg0: i32, %arg1: i32, %arg2: i32, %arg3: i32) -> (i32, i32, i32) {
    %c1_i32 = arith.constant 1 : i32
    %0 = arith.muli %arg1, %c1_i32 : i32
    %1 = arith.addi %0, %arg2 : i32
    %c0_i32 = arith.constant 0 : i32
    return %arg0, %1, %arg3 : i32, i32, i32
  }
  func.func @transform_1(%arg0: i32, %arg1: i32, %arg2: i32, %arg3: i32) -> (i32, i32, i32) {
    %c0_i32 = arith.constant 0 : i32
    %c0_i32_0 = arith.constant 0 : i32
    return %arg0, %c0_i32, %arg3 : i32, i32, i32
  }
  func.func @transform_2(%arg0: i32, %arg1: i32, %arg2: i32, %arg3: i32) -> (i32, i32, i32, i32) {
    %c0_i32 = arith.constant 0 : i32
    %c0_i32_0 = arith.constant 0 : i32
    %c0_i32_1 = arith.constant 0 : i32
    return %arg0, %arg1, %c0_i32, %c0_i32_0 : i32, i32, i32, i32
  }
}

</mosaic_0001>

<llo_original>
// kernel: tpu_custom_call.1
$region0: #{tpu_custom_call.1}
  #allocation0 [shape = 'u32[]', space=smem, size = 0x4, offset = 0x4, fixed_abs, tag = 'smem constant byte address 0x4 - core index']
  #allocation1 [shape = 'u32[72,128]{1,0:T(1,128)}', space=vmem, size = 0x9000, scoped, tag = 'internal scratch']
  #allocation2 [shape = 'f32[8,64]{1,0:T(8,128)}', space=vmem, size = 0x1000, scoped, tag = 'scratch operand']
  %s0 = inlined_call_operand.hbm [shape: f32[1,64,64], index: 0, kind: input, shape index: {}]
  %s1 = inlined_call_operand.hbm [shape: f32[1,8,64], index: 1, kind: input, shape index: {}]
  %s2 = inlined_call_operand.hbm [shape: f32[1,1,8,128], index: 2, kind: output, shape index: {}]
  %s3 = sld [smem:[#allocation0]]
  $region34: #{tpu_custom_call.1} parent=0
    _
  %s5 = ssub.s32 1, %s3
  %s6 = scalar_select 0, %s5, %s3
  $region1: #{tpu_custom_call.1} parent=0
    #allocation3 [shape = 'u8[32768]{0}', space=vmem, size = 0x8000, scoped, tag = 'input window, operand 0, single buffered']
    #allocation4 [shape = 's32[1]{0}', space=sflag, size = 0x4, scoped, tag = 'scoped memory for tpu_custom_call.1']
    #allocation5 [shape = 's32[1]{0}', space=sflag, size = 0x4, scoped, tag = 'scoped memory for tpu_custom_call.1']
    #allocation6 [shape = 'u8[4096]{0}', space=vmem, size = 0x1000, scoped, tag = 'input window, operand 1, single buffered']
    #allocation7 [shape = 's32[1]{0}', space=sflag, size = 0x4, scoped, tag = 'scoped memory for tpu_custom_call.1']
    #allocation8 [shape = 'u8[4096]{0}', space=vmem, size = 0x1000, scoped, tag = 'output window, operand 0, single buffered']
    %7 = vsyncpa [#allocation4], 0
    %8 = vsyncpa [#allocation7], 0
    %9 = vsyncpa [#allocation5], 0
    // Predicated region
    $region2: #{tpu_custom_call.1} parent=1 // pred_check
      _
    $region3: #{tpu_custom_call.1} parent=1 // pred_check_branch
      %11 = sbr.rel (0) target = $region5
    $region4: #{tpu_custom_call.1} parent=1 // pred_region
      %s12 = sadd.s32 0, 0
      %s13 = smul.u32 8, %s12
      %15 = vsyncadd [#allocation4], 0
      %s16 = smul.addr %s13, 8
      %s17 = scalar_lea.hbm %s0, %s16
      %s18 = sshll.u32 %s17, 4
      %s19 = int_to_ptr.hbm [resolvable:$true] %s18
      %s20 = sshll.u32 [#allocation3], 4
      %s21 = int_to_ptr.vmem [resolvable:$true] %s20
      %26 = dma.hbm_to_vmem [thread:$0]  %s19, 1024, %s21, [#allocation4], 128, 128, 8
    $region5: #{tpu_custom_call.1} parent=1 // pred_fallthru
      _
    // Predicated region
    $region6: #{tpu_custom_call.1} parent=1 // pred_check
      _
    $region7: #{tpu_custom_call.1} parent=1 // pred_check_branch
      %28 = sbr.rel (0) target = $region9
    $region8: #{tpu_custom_call.1} parent=1 // pred_region
      %30 = vsyncadd [#allocation7], 0
      %s32 = sshll.u32 %s1, 4
      %s33 = int_to_ptr.hbm [resolvable:$true] %s32
      %s34 = sshll.u32 [#allocation6], 4
      %s35 = int_to_ptr.vmem [resolvable:$true] %s34
      %37 = dma.hbm_to_vmem [thread:$0]  %s33, 128, %s35, [#allocation7]
    $region9: #{tpu_custom_call.1} parent=1 // pred_fallthru
      _
    // Predicated region
    $region10: #{tpu_custom_call.1} parent=1 // pred_check
      _
    $region11: #{tpu_custom_call.1} parent=1 // pred_check_branch
      %39 = sbr.rel (0) target = $region13
    $region12: #{tpu_custom_call.1} parent=1 // pred_region
      %41 = dma.done [#allocation4], 1024
    $region13: #{tpu_custom_call.1} parent=1 // pred_fallthru
      _
    // Predicated region
    $region14: #{tpu_custom_call.1} parent=1 // pred_check
      _
    $region15: #{tpu_custom_call.1} parent=1 // pred_check_branch
      %43 = sbr.rel (0) target = $region17
    $region16: #{tpu_custom_call.1} parent=1 // pred_region
      %45 = dma.done [#allocation7], 128
    $region17: #{tpu_custom_call.1} parent=1 // pred_fallthru
      _
    %s46 = sadd.s32 0, 0
    %s47 = smul.u32 8, %s46
    %p48 = scmp.eq.s32.totalorder 0, 0
    %p49 = scmp.eq.s32.totalorder 0, 0
    %p50 = pnand %p48, %p49
    %p51 = pneg %p50
    // Predicated region
    $region18: #{tpu_custom_call.1} parent=1 // pred_check
      _
    $region19: #{tpu_custom_call.1} parent=1 // pred_check_branch
      %53 = sbr.rel (%p50) target = $region21
    $region20: #{tpu_custom_call.1} parent=1 // pred_region
      %vm54 = vcmask 523264
      %55 = vst.msk [vmem:[#allocation2] sm:$0xff] %vm54, 0.0
    $region21: #{tpu_custom_call.1} parent=1 // pred_fallthru
      _
    %v56 = vld [vmem:[#allocation6] sm:$0xff]
    %v57 = vld [vmem:[#allocation3] sm:$0xff]
    %v58 = vld [vmem:[#allocation3 + $0x8] sm:$0xff]
    %v59 = vld [vmem:[#allocation3 + $0x10] sm:$0xff]
    %v60 = vld [vmem:[#allocation3 + $0x18] sm:$0xff]
    %v61 = vld [vmem:[#allocation3 + $0x20] sm:$0xff]
    %v62 = vld [vmem:[#allocation3 + $0x28] sm:$0xff]
    %v63 = vld [vmem:[#allocation3 + $0x30] sm:$0xff]
    %v64 = vld [vmem:[#allocation3 + $0x38] sm:$0xff]
    %vm65 = vcmask 523264
    %v67 = vsel %vm65, %v56, 0
    %v70 = vsel %vm65, %v57, 0
    %v73 = vsel %vm65, %v58, 0
    %v76 = vsel %vm65, %v59, 0
    %v79 = vsel %vm65, %v60, 0
    %v82 = vsel %vm65, %v61, 0
    %v85 = vsel %vm65, %v62, 0
    %v88 = vsel %vm65, %v63, 0
    %v91 = vsel %vm65, %v64, 0
    %93 = vmatpush.xpose.msra.mxu0 0.0
    %94 = vmatpush.xpose.msra.mxu0 0.0
    %95 = vmatpush.xpose.msra.mxu0 0.0
    %96 = vmatpush.xpose.msra.mxu0 0.0
    %97 = vmatpush.xpose.msra.mxu0 0.0
    %98 = vmatpush.xpose.msra.mxu0 0.0
    %99 = vmatpush.xpose.msra.mxu0 0.0
    %100 = vmatpush.xpose.msra.mxu0 0.0
    %101 = vmatpush.xpose.msra.mxu0 %v91
    %102 = vmatpush.xpose.msra.mxu0 %v88
    %103 = vmatpush.xpose.msra.mxu0 %v85
    %104 = vmatpush.xpose.msra.mxu0 %v82
    %105 = vmatpush.xpose.msra.mxu0 %v79
    %106 = vmatpush.xpose.msra.mxu0 %v76
    %107 = vmatpush.xpose.msra.mxu0 %v73
    %108 = vmatpush.xpose.msra.mxu0 %v70
    %109 = vmatmul.f32.gmra.mxu0 %v67
    %v110 = vpop.f32.mrf.mxu0
    %v111 = vadd.f32 0.0, %v110
    %112 = vdwg.mxu0
    %v113 = vld [vmem:[#allocation2] sm:$0xff]
    %v114 = vmul.f32 %v111, %v111
    %v115 = vadd.f32 %v113, %v114
    %116 = vst.msk [vmem:[#allocation2] sm:$0xff] %vm65, %v115
    // Predicated region
    $region22: #{tpu_custom_call.1} parent=1 // pred_check
      _
    $region23: #{tpu_custom_call.1} parent=1 // pred_check_branch
      %118 = sbr.rel (%p50) target = $region25
    $region24: #{tpu_custom_call.1} parent=1 // pred_region
      %v119 = vld [vmem:[#allocation2] sm:$0xff]
      %v120 = vsel %vm65, %v119, 0.0
      %121 = vadd.xlane.f32.xlu0 %v120
      %v122 = vpop.xlane.xlu0 %121
      %v123 = vrot.slane %v122, 4
      %v124 = vadd.f32 %v122, %v123
      %v125 = vrot.slane %v124, 2
      %v126 = vadd.f32 %v124, %v125
      %v127 = vrot.slane %v126, 1
      %v128 = vadd.f32 %v126, %v127
      %s129 = vtos %v128
      %v130 = vstv %s129
      %131 = vst [vmem:[#allocation8] sm:$0xff] %v130
    $region25: #{tpu_custom_call.1} parent=1 // pred_fallthru
      _
    // Predicated region
    $region26: #{tpu_custom_call.1} parent=1 // pred_check
      _
    $region27: #{tpu_custom_call.1} parent=1 // pred_check_branch
      %133 = sbr.rel (0) target = $region29
    $region28: #{tpu_custom_call.1} parent=1 // pred_region
      %135 = vsyncadd [#allocation5], 0
      %s137 = sshll.u32 [#allocation8], 4
      %s138 = int_to_ptr.vmem [resolvable:$true] %s137
      %s139 = sshll.u32 %s2, 4
      %s140 = int_to_ptr.hbm [resolvable:$true] %s139
      %142 = dma.vmem_to_hbm [thread:$0]  %s138, 128, %s140, [#allocation5]
    $region29: #{tpu_custom_call.1} parent=1 // pred_fallthru
      _
    // Predicated region
    $region30: #{tpu_custom_call.1} parent=1 // pred_check
      _
    $region31: #{tpu_custom_call.1} parent=1 // pred_check_branch
      %144 = sbr.rel (0) target = $region33
    $region32: #{tpu_custom_call.1} parent=1 // pred_region
      %146 = dma.done [#allocation5], 128
    $region33: #{tpu_custom_call.1} parent=1 // pred_fallthru
      _
    %147 = vsyncpa [#allocation4], 1
    %148 = vsyncpa [#allocation7], 1
    %149 = vsyncpa [#allocation5], 1

</llo_original>
